<compile_context>
chip_gen: v7x
topology: tpu7x:2x2x1
jax: 0.10.0
libtpu: 0.0.40
codegen_flags: <defaults>
</compile_context>

<pallas_src>
import functools

import jax
import jax.numpy as jnp
from jax import lax
from jax.experimental import pallas as pl
from jax.experimental.pallas import tpu as pltpu


def _kd_partial_kernel(sl_ref, tl_ref, sg_ref, tg_ref,
                       ss_ref, ts_ref, sm_ref, tm_ref,
                       *, c, tile_n, n_valid, needs_mask):
    """Accumulates per-batch class-masked logit sums and class counts.

    Blocks:
      sl_ref/tl_ref : (1, c, tile_n) logits, native dtype
      sg_ref/tg_ref : (1, 1, tile_n) int32 label maps
      ss_ref/ts_ref : (1, c, c)  f32 output accumulators  S[i, j] = sum_n 1[lab==i]*logit[j]
      sm_ref/tm_ref : (1, c, 1)  f32 output accumulators  M[i]    = sum_n 1[lab==i]
    """
    k = pl.program_id(1)

    @pl.when(k == 0)
    def _():
        ss_ref[...] = jnp.zeros_like(ss_ref)
        ts_ref[...] = jnp.zeros_like(ts_ref)
        sm_ref[...] = jnp.zeros_like(sm_ref)
        tm_ref[...] = jnp.zeros_like(tm_ref)

    sl = sl_ref[0].astype(jnp.float32)          # (c, tile_n)
    tl = tl_ref[0].astype(jnp.float32)
    s_lab = sg_ref[0]                           # (1, tile_n) int32
    t_lab = tg_ref[0]

    # In-kernel one-hot: row i of the iota is class i.
    cls = lax.broadcasted_iota(jnp.int32, (c, tile_n), 0)
    s_oh = (cls == s_lab).astype(jnp.float32)   # (c, tile_n)
    t_oh = (cls == t_lab).astype(jnp.float32)

    if needs_mask:
        # Ragged tail: zero out lanes past the true N (block contents there are
        # unspecified) in both the one-hot and the logits (avoids NaN * 0 in the MXU).
        col = lax.broadcasted_iota(jnp.int32, (1, tile_n), 1) + k * tile_n
        valid = col < n_valid                   # (1, tile_n) bool
        s_oh = jnp.where(valid, s_oh, 0.0)
        t_oh = jnp.where(valid, t_oh, 0.0)
        sl = jnp.where(valid, sl, 0.0)
        tl = jnp.where(valid, tl, 0.0)

    dims = (((1,), (1,)), ((), ()))             # contract over the lane (voxel) axis
    ss_ref[0] += lax.dot_general(s_oh, sl, dims, preferred_element_type=jnp.float32)
    ts_ref[0] += lax.dot_general(t_oh, tl, dims, preferred_element_type=jnp.float32)
    # Class counts: cross-lane reduce; hidden under the DMA shadow (kernel is mem-bound).
    sm_ref[0] += jnp.sum(s_oh, axis=1, keepdims=True)
    tm_ref[0] += jnp.sum(t_oh, axis=1, keepdims=True)


def _round_down_to(x, m):
    return (x // m) * m


def _pick_tile_n(n, c, itemsize, target_bytes=4 * 1024 * 1024):
    """Largest lane tile whose double-buffered input working set fits ~target_bytes."""
    # Bytes per lane column per grid step: 2 logit streams (c rows, native dtype)
    # + 2 int32 label rows; the BlockSpec pipeline double-buffers each input.
    per_lane = 2 * (c * itemsize + 4)
    tile = target_bytes // (2 * per_lane)
    tile = max(128, min(int(tile), 32768))
    tile = _round_down_to(tile, 128)
    if n >= 128:
        tile = min(tile, _round_down_to(n, 128))
    return max(tile, 128)


def _to_labels(gt, logits_shape):
    """Convert gt to an int32 label map of shape (B, 1, N)."""
    b = logits_shape[0]
    if tuple(gt.shape) == tuple(logits_shape):
        # Dense gt of the same shape as logits (PyTorch uses it directly as masks;
        # in practice it is one-hot).  Recover the label map so the kernel can
        # rebuild the one-hot on-chip instead of streaming C*N floats from HBM.
        # TODO(synk): soft (non-one-hot) dense gt masks are not supported by this
        # fast path; they would need a dense-mask kernel variant.
        labels = jnp.argmax(gt, axis=1)
    else:
        labels = gt
        if labels.ndim == len(logits_shape):     # (B, 1, H, W, Z)
            labels = labels[:, 0]
        # else: (B, H, W, Z) label map -- the intended semantics of the PyTorch
        # `len(src_gt) == 4` branch (which actually checks batch size).
    return labels.astype(jnp.int32).reshape(b, 1, -1)


def dsbn_kd_loss(src_logits, trg_logits, src_gt, trg_gt,
                 eps=1e-6, temperature=2.0, tile_n=None):
    b, c, h, w, z = src_logits.shape
    n = h * w * z

    sl = src_logits.reshape(b, c, n)             # free reshapes, native dtype/layout
    tl = trg_logits.reshape(b, c, n)
    sg = _to_labels(src_gt, src_logits.shape)    # (b, 1, n) int32
    tg = _to_labels(trg_gt, trg_logits.shape)

    if tile_n is None:
        tile_n = _pick_tile_n(n, c, jnp.dtype(src_logits.dtype).itemsize)
    n_tiles = pl.cdiv(n, tile_n)
    needs_mask = (n % tile_n) != 0

    kernel = functools.partial(_kd_partial_kernel, c=c, tile_n=tile_n,
                               n_valid=n, needs_mask=needs_mask)

    logit_spec = pl.BlockSpec((1, c, tile_n), lambda bb, kk: (bb, 0, kk))
    label_spec = pl.BlockSpec((1, 1, tile_n), lambda bb, kk: (bb, 0, kk))
    out_cc = pl.BlockSpec((1, c, c), lambda bb, kk: (bb, 0, 0))
    out_c1 = pl.BlockSpec((1, c, 1), lambda bb, kk: (bb, 0, 0))

    ss, ts, sm, tm = pl.pallas_call(
        kernel,
        out_shape=(
            jax.ShapeDtypeStruct((b, c, c), jnp.float32),
            jax.ShapeDtypeStruct((b, c, c), jnp.float32),
            jax.ShapeDtypeStruct((b, c, 1), jnp.float32),
            jax.ShapeDtypeStruct((b, c, 1), jnp.float32),
        ),
        grid_spec=pltpu.PrefetchScalarGridSpec(
            num_scalar_prefetch=0,
            grid=(b, n_tiles),
            in_specs=[logit_spec, logit_spec, label_spec, label_spec],
            out_specs=(out_cc, out_cc, out_c1, out_c1),
        ),
        compiler_params=pltpu.CompilerParams(
            dimension_semantics=("parallel", "arbitrary")),
    )(sl, tl, sg, tg)

    # Tiny O(c^2) epilogue in plain JAX (per perf review): combine per-batch partials,
    # per-class averaged logits, temperature log-softmax, symmetric KL.
    s_avg = ss.sum(axis=0) / (sm.sum(axis=0) + eps)      # (c, c): row i = class-i avg logits
    t_avg = ts.sum(axis=0) / (tm.sum(axis=0) + eps)
    s_lp = jax.nn.log_softmax(s_avg / temperature, axis=-1)
    t_lp = jax.nn.log_softmax(t_avg / temperature, axis=-1)
    s_p, t_p = jnp.exp(s_lp), jnp.exp(t_lp)
    kl = jnp.sum(s_p * (s_lp - t_lp) + t_p * (t_lp - s_lp), axis=-1)   # (c,)
    return jnp.sum(kl) * 0.5 / c


# ---------------------------------------------------------------------------
# Pure-JAX reference mirroring the PyTorch forward loop (test-only).
# ---------------------------------------------------------------------------
def _maybe_one_hot_ref(gt, logits_shape):
    c = logits_shape[1]
    if tuple(gt.shape) == tuple(logits_shape):
        return gt.astype(jnp.float32)
    if gt.ndim == len(logits_shape):
        gt = gt[:, 0]
    return jax.nn.one_hot(gt.astype(jnp.int32), c, axis=1, dtype=jnp.float32)


def _reference(src_logits, trg_logits, src_gt, trg_gt, eps=1e-6, temperature=2.0):
    c = src_logits.shape[1]
    sg = _maybe_one_hot_ref(src_gt, src_logits.shape)
    tg = _maybe_one_hot_ref(trg_gt, trg_logits.shape)
    sl = src_logits.astype(jnp.float32)
    tl = trg_logits.astype(jnp.float32)
    total = 0.0
    for i in range(c):
        s_avg = jnp.sum(sl * sg[:, i:i + 1], axis=(0, 2, 3, 4)) / (jnp.sum(sg[:, i]) + eps)
        t_avg = jnp.sum(tl * tg[:, i:i + 1], axis=(0, 2, 3, 4)) / (jnp.sum(tg[:, i]) + eps)
        sp = jax.nn.softmax(s_avg / temperature)
        tp = jax.nn.softmax(t_avg / temperature)
        total += (jnp.sum(sp * jnp.log(sp / tp)) + jnp.sum(tp * jnp.log(tp / sp))) / 2.0
    return total / c


if __name__ == "__main__":
    key = jax.random.PRNGKey(0)
    k1, k2, k3, k4, k5, k6, k7, k8 = jax.random.split(key, 8)

    # Test 1: int label-map gt, lane-aligned N; B=2 exercises the "parallel" batch axis.
    b, c, h, w, z = 2, 4, 8, 8, 8
    src_logits = jax.random.normal(k1, (b, c, h, w, z), dtype=jnp.float32)
    trg_logits = jax.random.normal(k2, (b, c, h, w, z), dtype=jnp.float32)
    src_gt = jax.random.randint(k3, (b, h, w, z), 0, c)
    trg_gt = jax.random.randint(k4, (b, h, w, z), 0, c)

    loss = jax.block_until_ready(dsbn_kd_loss(src_logits, trg_logits, src_gt, trg_gt))
    ref = jax.block_until_ready(_reference(src_logits, trg_logits, src_gt, trg_gt))
    assert abs(float(loss) - float(ref)) < 1e-4, (float(loss), float(ref))

    # Test 2: dense one-hot gt (same shape as logits) and ragged N -> in-kernel tail mask.
    b2, c2, h2, w2, z2 = 1, 4, 5, 7, 9
    src_logits2 = jax.random.normal(k5, (b2, c2, h2, w2, z2), dtype=jnp.float32)
    trg_logits2 = jax.random.normal(k6, (b2, c2, h2, w2, z2), dtype=jnp.float32)
    src_lab2 = jax.random.randint(k7, (b2, h2, w2, z2), 0, c2)
    trg_lab2 = jax.random.randint(k8, (b2, h2, w2, z2), 0, c2)
    src_gt2 = jax.nn.one_hot(src_lab2, c2, axis=1, dtype=jnp.float32)
    trg_gt2 = jax.nn.one_hot(trg_lab2, c2, axis=1, dtype=jnp.float32)

    loss2 = jax.block_until_ready(dsbn_kd_loss(src_logits2, trg_logits2, src_gt2, trg_gt2))
    ref2 = jax.block_until_ready(_reference(src_logits2, trg_logits2, src_gt2, trg_gt2))
    assert abs(float(loss2) - float(ref2)) < 1e-4, (float(loss2), float(ref2))

    print("KERNEL_OK")
</pallas_src>

<mosaic_0001>
module attributes {stable_mosaic.version = 11 : i64} {
  func.func @_kd_partial_kernel(%arg0: i32, %arg1: i32, %arg2: memref<1x4x512xf32, #tpu.memory_space<vmem>>, %arg3: memref<1x4x512xf32, #tpu.memory_space<vmem>>, %arg4: memref<1x1x512xi32, #tpu.memory_space<vmem>>, %arg5: memref<1x1x512xi32, #tpu.memory_space<vmem>>, %arg6: memref<1x4x4xf32, #tpu.memory_space<vmem>>, %arg7: memref<1x4x4xf32, #tpu.memory_space<vmem>>, %arg8: memref<1x4x1xf32, #tpu.memory_space<vmem>>, %arg9: memref<1x4x1xf32, #tpu.memory_space<vmem>>) attributes {dimension_semantics = [#tpu.dimension_semantics<parallel>, #tpu.dimension_semantics<arbitrary>], iteration_bounds = array<i64: 2, 1>, scalar_prefetch = 0 : i64, scratch_operands = 0 : i64, tpu.core_type = #tpu.core_type<tc>, window_params = [{transform_indices = @transform_0, window_bounds = array<i64: 1, 4, 512>}, {transform_indices = @transform_1, window_bounds = array<i64: 1, 4, 512>}, {transform_indices = @transform_2, window_bounds = array<i64: 1, 1, 512>}, {transform_indices = @transform_3, window_bounds = array<i64: 1, 1, 512>}, {transform_indices = @transform_4, window_bounds = array<i64: 1, 4, 4>}, {transform_indices = @transform_5, window_bounds = array<i64: 1, 4, 4>}, {transform_indices = @transform_6, window_bounds = array<i64: 1, 4, 1>}, {transform_indices = @transform_7, window_bounds = array<i64: 1, 4, 1>}]} {
    %c0_i32 = arith.constant 0 : i32
    %0 = arith.cmpi eq, %arg1, %c0_i32 : i32
    %1 = arith.extui %0 : i1 to i32
    %c0_i32_0 = arith.constant 0 : i32
    %2 = arith.cmpi ne, %1, %c0_i32_0 : i32
    scf.if %2 {
      %cst_39 = arith.constant 0.000000e+00 : f32
      %50 = vector.broadcast %cst_39 : f32 to vector<1x4x4xf32>
      %c0_40 = arith.constant 0 : index
      %c0_41 = arith.constant 0 : index
      %c0_42 = arith.constant 0 : index
      %51 = vector.load %arg6[%c0_40, %c0_41, %c0_42] : memref<1x4x4xf32, #tpu.memory_space<vmem>>, vector<1x4x4xf32>
      tpu.vector_store %arg6[%c0_40, %c0_41, %c0_42], %50 {strides = array<i32>} : memref<1x4x4xf32, #tpu.memory_space<vmem>>, vector<1x4x4xf32>,
      %cst_43 = arith.constant 0.000000e+00 : f32
      %52 = vector.broadcast %cst_43 : f32 to vector<1x4x4xf32>
      %c0_44 = arith.constant 0 : index
      %c0_45 = arith.constant 0 : index
      %c0_46 = arith.constant 0 : index
      %53 = vector.load %arg7[%c0_44, %c0_45, %c0_46] : memref<1x4x4xf32, #tpu.memory_space<vmem>>, vector<1x4x4xf32>
      tpu.vector_store %arg7[%c0_44, %c0_45, %c0_46], %52 {strides = array<i32>} : memref<1x4x4xf32, #tpu.memory_space<vmem>>, vector<1x4x4xf32>,
      %cst_47 = arith.constant 0.000000e+00 : f32
      %54 = vector.broadcast %cst_47 : f32 to vector<1x4x1xf32>
      %c0_48 = arith.constant 0 : index
      %c0_49 = arith.constant 0 : index
      %c0_50 = arith.constant 0 : index
      %55 = vector.load %arg8[%c0_48, %c0_49, %c0_50] : memref<1x4x1xf32, #tpu.memory_space<vmem>>, vector<1x4x1xf32>
      tpu.vector_store %arg8[%c0_48, %c0_49, %c0_50], %54 {strides = array<i32>} : memref<1x4x1xf32, #tpu.memory_space<vmem>>, vector<1x4x1xf32>,
      %cst_51 = arith.constant 0.000000e+00 : f32
      %56 = vector.broadcast %cst_51 : f32 to vector<1x4x1xf32>
      %c0_52 = arith.constant 0 : index
      %c0_53 = arith.constant 0 : index
      %c0_54 = arith.constant 0 : index
      %57 = vector.load %arg9[%c0_52, %c0_53, %c0_54] : memref<1x4x1xf32, #tpu.memory_space<vmem>>, vector<1x4x1xf32>
      tpu.vector_store %arg9[%c0_52, %c0_53, %c0_54], %56 {strides = array<i32>} : memref<1x4x1xf32, #tpu.memory_space<vmem>>, vector<1x4x1xf32>,
    } else {
    }
    %c0 = arith.constant 0 : index
    %c0_1 = arith.constant 0 : index
    %c0_2 = arith.constant 0 : index
    %3 = vector.load %arg2[%c0, %c0_1, %c0_2] : memref<1x4x512xf32, #tpu.memory_space<vmem>>, vector<1x4x512xf32>
    %4 = vector.shape_cast %3 : vector<1x4x512xf32> to vector<4x512xf32>
    %c0_3 = arith.constant 0 : index
    %c0_4 = arith.constant 0 : index
    %c0_5 = arith.constant 0 : index
    %5 = vector.load %arg3[%c0_3, %c0_4, %c0_5] : memref<1x4x512xf32, #tpu.memory_space<vmem>>, vector<1x4x512xf32>
    %6 = vector.shape_cast %5 : vector<1x4x512xf32> to vector<4x512xf32>
    %c0_6 = arith.constant 0 : index
    %c0_7 = arith.constant 0 : index
    %c0_8 = arith.constant 0 : index
    %7 = vector.load %arg4[%c0_6, %c0_7, %c0_8] : memref<1x1x512xi32, #tpu.memory_space<vmem>>, vector<1x1x512xi32>
    %8 = vector.shape_cast %7 : vector<1x1x512xi32> to vector<1x512xi32>
    %c0_9 = arith.constant 0 : index
    %c0_10 = arith.constant 0 : index
    %c0_11 = arith.constant 0 : index
    %9 = vector.load %arg5[%c0_9, %c0_10, %c0_11] : memref<1x1x512xi32, #tpu.memory_space<vmem>>, vector<1x1x512xi32>
    %10 = vector.shape_cast %9 : vector<1x1x512xi32> to vector<1x512xi32>
    %11 = tpu.iota {dimensions = array<i32: 0>} : vector<4x512xi32>
    %12 = vector.broadcast %8 : vector<1x512xi32> to vector<4x512xi32>
    %13 = arith.cmpi eq, %11, %12 : vector<4x512xi32>
    %14 = arith.extui %13 : vector<4x512xi1> to vector<4x512xi32>
    %15 = arith.sitofp %14 : vector<4x512xi32> to vector<4x512xf32>
    %16 = vector.broadcast %10 : vector<1x512xi32> to vector<4x512xi32>
    %17 = arith.cmpi eq, %11, %16 : vector<4x512xi32>
    %18 = arith.extui %17 : vector<4x512xi1> to vector<4x512xi32>
    %19 = arith.sitofp %18 : vector<4x512xi32> to vector<4x512xf32>
    %c0_12 = arith.constant 0 : index
    %c0_13 = arith.constant 0 : index
    %c0_14 = arith.constant 0 : index
    %20 = vector.load %arg6[%c0_12, %c0_13, %c0_14] : memref<1x4x4xf32, #tpu.memory_space<vmem>>, vector<1x4x4xf32>
    %21 = vector.shape_cast %20 : vector<1x4x4xf32> to vector<4x4xf32>
    %cst = arith.constant dense<0.000000e+00> : vector<4x4xf32>
    %22 = tpu.matmul %15, %4, %cst {dimension_numbers = #tpu.dot_dimension_numbers<[1], [1], [0], [0], [0, 0, 1, 0], [], []>} : vector<4x512xf32>, vector<4x512xf32>, vector<4x4xf32> -> vector<4x4xf32>
    %23 = arith.addf %21, %22 : vector<4x4xf32>
    %c0_15 = arith.constant 0 : index
    %c0_16 = arith.constant 0 : index
    %c0_17 = arith.constant 0 : index
    %24 = vector.load %arg6[%c0_15, %c0_16, %c0_17] : memref<1x4x4xf32, #tpu.memory_space<vmem>>, vector<1x4x4xf32>
    %25 = vector.shape_cast %24 : vector<1x4x4xf32> to vector<4x4xf32>
    %26 = vector.shape_cast %23 : vector<4x4xf32> to vector<1x4x4xf32>
    tpu.vector_store %arg6[%c0_15, %c0_16, %c0_17], %26 {strides = array<i32>} : memref<1x4x4xf32, #tpu.memory_space<vmem>>, vector<1x4x4xf32>,
    %c0_18 = arith.constant 0 : index
    %c0_19 = arith.constant 0 : index
    %c0_20 = arith.constant 0 : index
    %27 = vector.load %arg7[%c0_18, %c0_19, %c0_20] : memref<1x4x4xf32, #tpu.memory_space<vmem>>, vector<1x4x4xf32>
    %28 = vector.shape_cast %27 : vector<1x4x4xf32> to vector<4x4xf32>
    %cst_21 = arith.constant dense<0.000000e+00> : vector<4x4xf32>
    %29 = tpu.matmul %19, %6, %cst_21 {dimension_numbers = #tpu.dot_dimension_numbers<[1], [1], [0], [0], [0, 0, 1, 0], [], []>} : vector<4x512xf32>, vector<4x512xf32>, vector<4x4xf32> -> vector<4x4xf32>
    %30 = arith.addf %28, %29 : vector<4x4xf32>
    %c0_22 = arith.constant 0 : index
    %c0_23 = arith.constant 0 : index
    %c0_24 = arith.constant 0 : index
    %31 = vector.load %arg7[%c0_22, %c0_23, %c0_24] : memref<1x4x4xf32, #tpu.memory_space<vmem>>, vector<1x4x4xf32>
    %32 = vector.shape_cast %31 : vector<1x4x4xf32> to vector<4x4xf32>
    %33 = vector.shape_cast %30 : vector<4x4xf32> to vector<1x4x4xf32>
    tpu.vector_store %arg7[%c0_22, %c0_23, %c0_24], %33 {strides = array<i32>} : memref<1x4x4xf32, #tpu.memory_space<vmem>>, vector<1x4x4xf32>,
    %c0_25 = arith.constant 0 : index
    %c0_26 = arith.constant 0 : index
    %c0_27 = arith.constant 0 : index
    %34 = vector.load %arg8[%c0_25, %c0_26, %c0_27] : memref<1x4x1xf32, #tpu.memory_space<vmem>>, vector<1x4x1xf32>
    %35 = vector.shape_cast %34 : vector<1x4x1xf32> to vector<4x1xf32>
    %cst_28 = arith.constant dense<0.000000e+00> : vector<4xf32>
    %36 = vector.multi_reduction <add>, %15, %cst_28 [1] : vector<4x512xf32> to vector<4xf32>
    %37 = vector.shape_cast %36 : vector<4xf32> to vector<4x1xf32>
    %38 = arith.addf %35, %37 : vector<4x1xf32>
    %c0_29 = arith.constant 0 : index
    %c0_30 = arith.constant 0 : index
    %c0_31 = arith.constant 0 : index
    %39 = vector.load %arg8[%c0_29, %c0_30, %c0_31] : memref<1x4x1xf32, #tpu.memory_space<vmem>>, vector<1x4x1xf32>
    %40 = vector.shape_cast %39 : vector<1x4x1xf32> to vector<4x1xf32>
    %41 = vector.shape_cast %38 : vector<4x1xf32> to vector<1x4x1xf32>
    tpu.vector_store %arg8[%c0_29, %c0_30, %c0_31], %41 {strides = array<i32>} : memref<1x4x1xf32, #tpu.memory_space<vmem>>, vector<1x4x1xf32>,
    %c0_32 = arith.constant 0 : index
    %c0_33 = arith.constant 0 : index
    %c0_34 = arith.constant 0 : index
    %42 = vector.load %arg9[%c0_32, %c0_33, %c0_34] : memref<1x4x1xf32, #tpu.memory_space<vmem>>, vector<1x4x1xf32>
    %43 = vector.shape_cast %42 : vector<1x4x1xf32> to vector<4x1xf32>
    %cst_35 = arith.constant dense<0.000000e+00> : vector<4xf32>
    %44 = vector.multi_reduction <add>, %19, %cst_35 [1] : vector<4x512xf32> to vector<4xf32>
    %45 = vector.shape_cast %44 : vector<4xf32> to vector<4x1xf32>
    %46 = arith.addf %43, %45 : vector<4x1xf32>
    %c0_36 = arith.constant 0 : index
    %c0_37 = arith.constant 0 : index
    %c0_38 = arith.constant 0 : index
    %47 = vector.load %arg9[%c0_36, %c0_37, %c0_38] : memref<1x4x1xf32, #tpu.memory_space<vmem>>, vector<1x4x1xf32>
    %48 = vector.shape_cast %47 : vector<1x4x1xf32> to vector<4x1xf32>
    %49 = vector.shape_cast %46 : vector<4x1xf32> to vector<1x4x1xf32>
    tpu.vector_store %arg9[%c0_36, %c0_37, %c0_38], %49 {strides = array<i32>} : memref<1x4x1xf32, #tpu.memory_space<vmem>>, vector<1x4x1xf32>,
    return
  }
  func.func @transform_0(%arg0: i32, %arg1: i32) -> (i32, i32, i32) {
    %c0_i32 = arith.constant 0 : i32
    %c0_i32_0 = arith.constant 0 : i32
    return %arg0, %c0_i32, %arg1 : i32, i32, i32
  }
  func.func @transform_1(%arg0: i32, %arg1: i32) -> (i32, i32, i32) {
    %c0_i32 = arith.constant 0 : i32
    %c0_i32_0 = arith.constant 0 : i32
    return %arg0, %c0_i32, %arg1 : i32, i32, i32
  }
  func.func @transform_2(%arg0: i32, %arg1: i32) -> (i32, i32, i32) {
    %c0_i32 = arith.constant 0 : i32
    %c0_i32_0 = arith.constant 0 : i32
    return %arg0, %c0_i32, %arg1 : i32, i32, i32
  }
  func.func @transform_3(%arg0: i32, %arg1: i32) -> (i32, i32, i32) {
    %c0_i32 = arith.constant 0 : i32
    %c0_i32_0 = arith.constant 0 : i32
    return %arg0, %c0_i32, %arg1 : i32, i32, i32
  }
  func.func @transform_4(%arg0: i32, %arg1: i32) -> (i32, i32, i32) {
    %c0_i32 = arith.constant 0 : i32
    %c0_i32_0 = arith.constant 0 : i32
    %c0_i32_1 = arith.constant 0 : i32
    return %arg0, %c0_i32, %c0_i32_0 : i32, i32, i32
  }
  func.func @transform_5(%arg0: i32, %arg1: i32) -> (i32, i32, i32) {
    %c0_i32 = arith.constant 0 : i32
    %c0_i32_0 = arith.constant 0 : i32
    %c0_i32_1 = arith.constant 0 : i32
    return %arg0, %c0_i32, %c0_i32_0 : i32, i32, i32
  }
  func.func @transform_6(%arg0: i32, %arg1: i32) -> (i32, i32, i32) {
    %c0_i32 = arith.constant 0 : i32
    %c0_i32_0 = arith.constant 0 : i32
    %c0_i32_1 = arith.constant 0 : i32
    return %arg0, %c0_i32, %c0_i32_0 : i32, i32, i32
  }
  func.func @transform_7(%arg0: i32, %arg1: i32) -> (i32, i32, i32) {
    %c0_i32 = arith.constant 0 : i32
    %c0_i32_0 = arith.constant 0 : i32
    %c0_i32_1 = arith.constant 0 : i32
    return %arg0, %c0_i32, %c0_i32_0 : i32, i32, i32
  }
}

</mosaic_0001>

<llo_original>
// kernel: tpu_custom_call.1
$region0: #{tpu_custom_call.1}
  #allocation0 [shape = 'u32[]', space=smem, size = 0x4, offset = 0x4, fixed_abs, tag = 'smem constant byte address 0x4 - core index']
  #allocation1 [shape = 'u32[144,128]{1,0:T(1,128)}', space=vmem, size = 0x12000, scoped, tag = 'internal scratch']
  %s0 = inlined_call_operand.hbm [shape: f32[2,4,512], index: 0, kind: input, shape index: {}]
  %s1 = inlined_call_operand.hbm [shape: f32[2,4,512], index: 1, kind: input, shape index: {}]
  %s2 = inlined_call_operand.hbm [shape: s32[2,1,512], index: 2, kind: input, shape index: {}]
  %s3 = inlined_call_operand.vmem [shape: s32[2,1,512], index: 3, kind: input, shape index: {}]
  %s4 = inlined_call_operand.hbm [shape: f32[2,4,4], index: 4, kind: output, shape index: {0}]
  %s5 = inlined_call_operand.hbm [shape: f32[2,4,4], index: 5, kind: output, shape index: {1}]
  %s6 = inlined_call_operand.vmem [shape: f32[2,4,1], index: 6, kind: output, shape index: {2}]
  %s7 = inlined_call_operand.vmem [shape: f32[2,4,1], index: 7, kind: output, shape index: {3}]
  %8 = xla_tuple %s4, %s5, %s6, %s7
  %s9 = sld [smem:[#allocation0]]
  $region89: #{tpu_custom_call.1} parent=0
    _
  %s11 = ssub.s32 1, %s9
  %s12 = scalar_select 0, %s11, %s9
  $region1: #{tpu_custom_call.1} parent=0
    #allocation2 [shape = 'u8[16384]{0}', space=vmem, size = 0x4000, scoped, tag = 'input window, operand 0']
    #allocation3 [shape = 's32[2]{0}', space=sflag, size = 0x8, scoped, tag = 'scoped memory for tpu_custom_call.1']
    #allocation4 [shape = 's32[2]{0}', space=sflag, size = 0x8, scoped, tag = 'scoped memory for tpu_custom_call.1']
    #allocation5 [shape = 'u8[16384]{0}', space=vmem, size = 0x4000, scoped, tag = 'input window, operand 1']
    #allocation6 [shape = 's32[2]{0}', space=sflag, size = 0x8, scoped, tag = 'scoped memory for tpu_custom_call.1']
    #allocation7 [shape = 'u8[4096]{0}', space=vmem, size = 0x1000, scoped, tag = 'input window, operand 2']
    #allocation8 [shape = 'u8[4096]{0}', space=vmem, size = 0x1000, scoped, tag = 'output window, operand 0']
    #allocation9 [shape = 'u8[4096]{0}', space=vmem, size = 0x1000, scoped, tag = 'output window, operand 1']
    #allocation10 [shape = 's32[2]{0}', space=sflag, size = 0x8, scoped, tag = 'scoped memory for tpu_custom_call.1']
    %13 = vsyncpa [#allocation3], 0
    %s14 = scalar_lea.sflag [#allocation3], 1
    %15 = vsyncpa %s14, 0
    %16 = vsyncpa [#allocation6], 0
    %s17 = scalar_lea.sflag [#allocation6], 1
    %18 = vsyncpa %s17, 0
    %19 = vsyncpa [#allocation4], 0
    %s20 = scalar_lea.sflag [#allocation4], 1
    %21 = vsyncpa %s20, 0
    %22 = vsyncpa [#allocation10], 0
    %s23 = scalar_lea.sflag [#allocation10], 1
    %24 = vsyncpa %s23, 0
    loop: start=0, step=1, limit=4
    $region2: #{tpu_custom_call.1} parent=1 // loop_pre_header
      _
    $region3: #{tpu_custom_call.1} parent=1 // loop_header
      %s26 = sphi 0, %s30
      %p27 = scmp.ge.s32.totalorder %s26, 4
      %s33 = sphi 0, %s45
      %s34 = sphi 0, %s41
      %s35 = sphi 0, %s33
      %s36 = sphi 0, %s34
      %s37 = sphi 0, %s35
      %s38 = sphi 0, %s36
      %s50 = sphi 0, %s52
      %s53 = sphi 0, %s50
      %s54 = sphi 0, %s53
      %s70 = sphi 0, %s54
      %s78 = sphi 0, %s80
      %s81 = sphi 0, %s78
      %s82 = sphi 0, %s81
      %s98 = sphi 0, %s82
      %s106 = sphi 0, %s108
      %s109 = sphi 0, %s106
      %s110 = sphi 0, %s109
      %s126 = sphi 0, %s110
      %s134 = sphi 0, %s136
      %s137 = sphi 0, %s134
      %s138 = sphi 0, %s137
      %s154 = sphi 0, %s138
      %s160 = sphi 0, %s162
      %s163 = sphi 0, %s160
      %s164 = sphi 0, %s163
      %s180 = sphi 0, %s164
      %s186 = sphi 0, %s188
      %s189 = sphi 0, %s186
      %s190 = sphi 0, %s189
      %s206 = sphi 0, %s190
      %s212 = sphi 0, %s214
      %s215 = sphi 0, %s212
      %s216 = sphi 0, %s215
      %s232 = sphi 0, %s216
      %s238 = sphi 0, %s240
      %s241 = sphi 0, %s238
      %s242 = sphi 0, %s241
      %s258 = sphi 0, %s242
    $region4: #{tpu_custom_call.1} parent=1 // loop_header_branch
      %29 = sbr.rel (%p27) target = $region8
    $region5: #{tpu_custom_call.1} parent=1 // loop_body
      %s31 = ssub.s32 %s26, 1
      %s32 = ssub.s32 %s26, 2
      %s39 = sadd.s32 1, %s34
      %p40 = scmp.ge.s32.totalorder %s39, 1
      %s41 = scalar_select %p40, 0, %s39
      %s42 = sadd.s32 1, %s33
      %s43 = scalar_select %p40, %s42, %s33
      %p44 = scmp.ge.s32.totalorder %s43, 2
      %s45 = scalar_select %p44, 0, %s43
      %s46 = ssub.s32 %s33, %s45
      %s47 = ssub.s32 %s34, %s41
      %s48 = sor.u32 %s46, %s47
      %p49 = scmp.eq.s32.totalorder %s48, 0
      %s51 = sadd.s32 %s50, 1
      %s52 = scalar_select %p49, %s50, %s51
      %p55 = pneg %p49
      %p56 = scmp.eq.s32.totalorder %s26, 1
      %p57 = por %p55, %p56
      %p58 = scmp.ne.s32.totalorder %s50, %s53
      %p59 = scmp.eq.s32.totalorder %s26, 0
      %p60 = por %p58, %p59
      %p61 = scmp.ne.s32.totalorder %s50, %s53
      %p62 = scmp.eq.s32.totalorder %s31, 1
      %p63 = por %p61, %p62
      %p64 = scmp.ne.s32.totalorder %s53, %s54
      %p65 = scmp.eq.s32.totalorder %s31, 0
      %p66 = por %p64, %p65
      %p67 = scmp.ne.s32.totalorder %s53, %s54
      %p68 = scmp.eq.s32.totalorder %s32, 1
      %p69 = por %p67, %p68
      %p71 = scmp.ne.s32.totalorder %s54, %s70
      %p72 = scmp.eq.s32.totalorder %s32, 0
      %p73 = por %p71, %p72
      %s74 = ssub.s32 %s33, %s45
      %s75 = ssub.s32 %s34, %s41
      %s76 = sor.u32 %s74, %s75
      %p77 = scmp.eq.s32.totalorder %s76, 0
      %s79 = sadd.s32 %s78, 1
      %s80 = scalar_select %p77, %s78, %s79
      %p83 = pneg %p77
      %p84 = scmp.eq.s32.totalorder %s26, 1
      %p85 = por %p83, %p84
      %p86 = scmp.ne.s32.totalorder %s78, %s81
      %p87 = scmp.eq.s32.totalorder %s26, 0
      %p88 = por %p86, %p87
      %p89 = scmp.ne.s32.totalorder %s78, %s81
      %p90 = scmp.eq.s32.totalorder %s31, 1
      %p91 = por %p89, %p90
      %p92 = scmp.ne.s32.totalorder %s81, %s82
      %p93 = scmp.eq.s32.totalorder %s31, 0
      %p94 = por %p92, %p93
      %p95 = scmp.ne.s32.totalorder %s81, %s82
      %p96 = scmp.eq.s32.totalorder %s32, 1
      %p97 = por %p95, %p96
      %p99 = scmp.ne.s32.totalorder %s82, %s98
      %p100 = scmp.eq.s32.totalorder %s32, 0
      %p101 = por %p99, %p100
      %s102 = ssub.s32 %s33, %s45
      %s103 = ssub.s32 %s34, %s41
      %s104 = sor.u32 %s102, %s103
      %p105 = scmp.eq.s32.totalorder %s104, 0
      %s107 = sadd.s32 %s106, 1
      %s108 = scalar_select %p105, %s106, %s107
      %p111 = pneg %p105
      %p112 = scmp.eq.s32.totalorder %s26, 1
      %p113 = por %p111, %p112
      %p114 = scmp.ne.s32.totalorder %s106, %s109
      %p115 = scmp.eq.s32.totalorder %s26, 0
      %p116 = por %p114, %p115
      %p117 = scmp.ne.s32.totalorder %s106, %s109
      %p118 = scmp.eq.s32.totalorder %s31, 1
      %p119 = por %p117, %p118
      %p120 = scmp.ne.s32.totalorder %s109, %s110
      %p121 = scmp.eq.s32.totalorder %s31, 0
      %p122 = por %p120, %p121
      %p123 = scmp.ne.s32.totalorder %s109, %s110
      %p124 = scmp.eq.s32.totalorder %s32, 1
      %p125 = por %p123, %p124
      %p127 = scmp.ne.s32.totalorder %s110, %s126
      %p128 = scmp.eq.s32.totalorder %s32, 0
      %p129 = por %p127, %p128
      %s130 = ssub.s32 %s33, %s45
      %s131 = ssub.s32 %s34, %s41
      %s132 = sor.u32 %s130, %s131
      %p133 = scmp.eq.s32.totalorder %s132, 0
      %s135 = sadd.s32 %s134, 1
      %s136 = scalar_select %p133, %s134, %s135
      %p139 = pneg %p133
      %p140 = scmp.eq.s32.totalorder %s26, 1
      %p141 = por %p139, %p140
      %p142 = scmp.ne.s32.totalorder %s134, %s137
      %p143 = scmp.eq.s32.totalorder %s26, 0
      %p144 = por %p142, %p143
      %p145 = scmp.ne.s32.totalorder %s134, %s137
      %p146 = scmp.eq.s32.totalorder %s31, 1
      %p147 = por %p145, %p146
      %p148 = scmp.ne.s32.totalorder %s137, %s138
      %p149 = scmp.eq.s32.totalorder %s31, 0
      %p150 = por %p148, %p149
      %p151 = scmp.ne.s32.totalorder %s137, %s138
      %p152 = scmp.eq.s32.totalorder %s32, 1
      %p153 = por %p151, %p152
      %p155 = scmp.ne.s32.totalorder %s138, %s154
      %p156 = scmp.eq.s32.totalorder %s32, 0
      %p157 = por %p155, %p156
      %s158 = ssub.s32 %s33, %s45
      %p159 = scmp.eq.s32.totalorder %s158, 0
      %s161 = sadd.s32 %s160, 1
      %s162 = scalar_select %p159, %s160, %s161
      %p165 = pneg %p159
      %p166 = scmp.eq.s32.totalorder %s26, 1
      %p167 = por %p165, %p166
      %p168 = scmp.ne.s32.totalorder %s160, %s163
      %p169 = scmp.eq.s32.totalorder %s26, 0
      %p170 = por %p168, %p169
      %p171 = scmp.ne.s32.totalorder %s160, %s163
      %p172 = scmp.eq.s32.totalorder %s31, 1
      %p173 = por %p171, %p172
      %p174 = scmp.ne.s32.totalorder %s163, %s164
      %p175 = scmp.eq.s32.totalorder %s31, 0
      %p176 = por %p174, %p175
      %p177 = scmp.ne.s32.totalorder %s163, %s164
      %p178 = scmp.eq.s32.totalorder %s32, 1
      %p179 = por %p177, %p178
      %p181 = scmp.ne.s32.totalorder %s164, %s180
      %p182 = scmp.eq.s32.totalorder %s32, 0
      %p183 = por %p181, %p182
      %s184 = ssub.s32 %s33, %s45
      %p185 = scmp.eq.s32.totalorder %s184, 0
      %s187 = sadd.s32 %s186, 1
      %s188 = scalar_select %p185, %s186, %s187
      %p191 = pneg %p185
      %p192 = scmp.eq.s32.totalorder %s26, 1
      %p193 = por %p191, %p192
      %p194 = scmp.ne.s32.totalorder %s186, %s189
      %p195 = scmp.eq.s32.totalorder %s26, 0
      %p196 = por %p194, %p195
      %p197 = scmp.ne.s32.totalorder %s186, %s189
      %p198 = scmp.eq.s32.totalorder %s31, 1
      %p199 = por %p197, %p198
      %p200 = scmp.ne.s32.totalorder %s189, %s190
      %p201 = scmp.eq.s32.totalorder %s31, 0
      %p202 = por %p200, %p201
      %p203 = scmp.ne.s32.totalorder %s189, %s190
      %p204 = scmp.eq.s32.totalorder %s32, 1
      %p205 = por %p203, %p204
      %p207 = scmp.ne.s32.totalorder %s190, %s206
      %p208 = scmp.eq.s32.totalorder %s32, 0
      %p209 = por %p207, %p208
      %s210 = ssub.s32 %s33, %s45
      %p211 = scmp.eq.s32.totalorder %s210, 0
      %s213 = sadd.s32 %s212, 1
      %s214 = scalar_select %p211, %s212, %s213
      %p217 = pneg %p211
      %p218 = scmp.eq.s32.totalorder %s26, 1
      %p219 = por %p217, %p218
      %p220 = scmp.ne.s32.totalorder %s212, %s215
      %p221 = scmp.eq.s32.totalorder %s26, 0
      %p222 = por %p220, %p221
      %p223 = scmp.ne.s32.totalorder %s212, %s215
      %p224 = scmp.eq.s32.totalorder %s31, 1
      %p225 = por %p223, %p224
      %p226 = scmp.ne.s32.totalorder %s215, %s216
      %p227 = scmp.eq.s32.totalorder %s31, 0
      %p228 = por %p226, %p227
      %p229 = scmp.ne.s32.totalorder %s215, %s216
      %p230 = scmp.eq.s32.totalorder %s32, 1
      %p231 = por %p229, %p230
      %p233 = scmp.ne.s32.totalorder %s216, %s232
      %p234 = scmp.eq.s32.totalorder %s32, 0
      %p235 = por %p233, %p234
      %s236 = ssub.s32 %s33, %s45
      %p237 = scmp.eq.s32.totalorder %s236, 0
      %s239 = sadd.s32 %s238, 1
      %s240 = scalar_select %p237, %s238, %s239
      %p243 = pneg %p237
      %p244 = scmp.eq.s32.totalorder %s26, 1
      %p245 = por %p243, %p244
      %p246 = scmp.ne.s32.totalorder %s238, %s241
      %p247 = scmp.eq.s32.totalorder %s26, 0
      %p248 = por %p246, %p247
      %p249 = scmp.ne.s32.totalorder %s238, %s241
      %p250 = scmp.eq.s32.totalorder %s31, 1
      %p251 = por %p249, %p250
      %p252 = scmp.ne.s32.totalorder %s241, %s242
      %p253 = scmp.eq.s32.totalorder %s31, 0
      %p254 = por %p252, %p253
      %p255 = scmp.ne.s32.totalorder %s241, %s242
      %p256 = scmp.eq.s32.totalorder %s32, 1
      %p257 = por %p255, %p256
      %p259 = scmp.ne.s32.totalorder %s242, %s258
      %p260 = scmp.eq.s32.totalorder %s32, 0
      %p261 = por %p259, %p260
      %p262 = scmp.le.s32.totalorder 1, %s26
      %p263 = scmp.lt.s32.totalorder %s26, 3
      %p264 = pnand %p262, %p263
      %p265 = pneg %p264
      // Predicated region
      $region9: #{tpu_custom_call.1} parent=5 // pred_check
        _
      $region10: #{tpu_custom_call.1} parent=5 // pred_check_branch
        %267 = sbr.rel (%p264) target = $region12
      $region11: #{tpu_custom_call.1} parent=5 // pred_region
        %s268 = ssub.s32 %s26, 1
      $region12: #{tpu_custom_call.1} parent=5 // pred_fallthru
        _
      %p269 = scmp.lt.s32.totalorder %s26, 2
      // Predicated region
      $region13: #{tpu_custom_call.1} parent=5 // pred_check
        %p270 = pneg %p269
      $region14: #{tpu_custom_call.1} parent=5 // pred_check_branch
        %272 = sbr.rel (%p270) target = $region16
      $region15: #{tpu_custom_call.1} parent=5 // pred_region
        // Predicated region
        $region17: #{tpu_custom_call.1} parent=15 // pred_check
          %p273 = pneg %p60
        $region18: #{tpu_custom_call.1} parent=15 // pred_check_branch
          %275 = sbr.rel (%p273) target = $region20
        $region19: #{tpu_custom_call.1} parent=15 // pred_region
          %s276 = sand.u32 %s50, 1
          %s277 = scalar_lea.sflag [#allocation3], %s276
          %s278 = sand.u32 %s50, 1
          %s279 = smul.addr %s278, 16
          %s280 = scalar_lea.vmem [#allocation2], %s279
          %s281 = smul.u32 4, %s34
          %s283 = ssub.s32 256, 256
          %284 = vsyncadd %s277, %s283
          %s285 = smul.addr %s33, 4
          %s286 = sadd.s32 %s281, %s285
          %s287 = smul.addr %s286, 64
          %s288 = scalar_lea.hbm %s0, %s287
          %s290 = sshll.u32 %s280, 4
          %s291 = int_to_ptr.vmem [resolvable:$true] %s290
          %293 = dma.hbm_to_vmem [thread:$0]  %s288, 256, %s291, %s277
        $region20: #{tpu_custom_call.1} parent=15 // pred_fallthru
          _
        // Predicated region
        $region21: #{tpu_custom_call.1} parent=15 // pred_check
          %p294 = pneg %p88
        $region22: #{tpu_custom_call.1} parent=15 // pred_check_branch
          %296 = sbr.rel (%p294) target = $region24
        $region23: #{tpu_custom_call.1} parent=15 // pred_region
          %s297 = sand.u32 %s26, 1
          %s298 = scalar_lea.sflag [#allocation6], %s297
          %s299 = sand.u32 %s78, 1
          %s300 = smul.addr %s299, 16
          %s301 = scalar_lea.vmem [#allocation5], %s300
          %s302 = smul.u32 4, %s34
          %s304 = ssub.s32 256, 256
          %305 = vsyncadd %s298, %s304
          %s306 = smul.addr %s33, 4
          %s307 = sadd.s32 %s302, %s306
          %s308 = smul.addr %s307, 64
          %s309 = scalar_lea.hbm %s1, %s308
          %s311 = sshll.u32 %s301, 4
          %s312 = int_to_ptr.vmem [resolvable:$true] %s311
          %314 = dma.hbm_to_vmem [thread:$0]  %s309, 256, %s312, %s298
        $region24: #{tpu_custom_call.1} parent=15 // pred_fallthru
          _
        // Predicated region
        $region25: #{tpu_custom_call.1} parent=15 // pred_check
          %p315 = pneg %p116
        $region26: #{tpu_custom_call.1} parent=15 // pred_check_branch
          %317 = sbr.rel (%p315) target = $region28
        $region27: #{tpu_custom_call.1} parent=15 // pred_region
          %s318 = sand.u32 %s26, 1
          %s319 = scalar_lea.sflag [#allocation6], %s318
          %s320 = sand.u32 %s106, 1
          %s321 = smul.addr %s320, 4
          %s322 = scalar_lea.vmem [#allocation7], %s321
          %s323 = smul.u32 4, %s34
          %s325 = ssub.s32 64, 64
          %326 = vsyncadd %s319, %s325
          %s327 = smul.addr %s33, 4
          %s328 = sadd.s32 %s323, %s327
          %s329 = smul.addr %s328, 16
          %s330 = scalar_lea.hbm %s2, %s329
          %s332 = sshll.u32 %s322, 4
          %s333 = int_to_ptr.vmem [resolvable:$true] %s332
          %335 = dma.hbm_to_vmem [thread:$0]  %s330, 64, %s333, %s319
        $region28: #{tpu_custom_call.1} parent=15 // pred_fallthru
          _
        // Predicated region
        $region29: #{tpu_custom_call.1} parent=15 // pred_check
          %p336 = pneg %p144
        $region30: #{tpu_custom_call.1} parent=15 // pred_check_branch
          %338 = sbr.rel (%p336) target = $region32
        $region31: #{tpu_custom_call.1} parent=15 // pred_region
          %s339 = smul.u32 4, %s34
          %p340 = scmp.lt.s32.totalorder %s33, 1
          %s341 = scalar_select %p340, %s33, 1
          %p342 = scmp.lt.s32.totalorder %s339, 3
          %s343 = scalar_select %p342, %s339, 3
          %s344 = smul.addr %s341, 4
          %s345 = sadd.s32 %s343, %s344
          %s346 = scalar_lea.vmem %s3, %s345
          %s347 = smul.u32 4, %s34
        $region32: #{tpu_custom_call.1} parent=15 // pred_fallthru
          _
      $region16: #{tpu_custom_call.1} parent=5 // pred_fallthru
        _
      %p348 = scmp.le.s32.totalorder 1, %s26
      %p349 = scmp.lt.s32.totalorder %s26, 3
      %p350 = pnand %p348, %p349
      %p351 = pneg %p350
      // Predicated region
      $region33: #{tpu_custom_call.1} parent=5 // pred_check
        _
      $region34: #{tpu_custom_call.1} parent=5 // pred_check_branch
        %353 = sbr.rel (%p350) target = $region36
      $region35: #{tpu_custom_call.1} parent=5 // pred_region
        %s354 = ssub.s32 %s26, 1
        %s355 = sand.u32 %s53, 1
        %s356 = scalar_lea.sflag [#allocation3], %s355
        %s357 = sand.u32 %s53, 1
        %s358 = smul.addr %s357, 16
        %s359 = scalar_lea.vmem [#allocation2], %s358
        // Predicated region
        $region37: #{tpu_custom_call.1} parent=35 // pred_check
          %p360 = pneg %p66
        $region38: #{tpu_custom_call.1} parent=35 // pred_check_branch
          %362 = sbr.rel (%p360) target = $region40
        $region39: #{tpu_custom_call.1} parent=35 // pred_region
          %363 = dma.done %s356, 256
        $region40: #{tpu_custom_call.1} parent=35 // pred_fallthru
          _
        %s364 = sand.u32 %s31, 1
        %s365 = scalar_lea.sflag [#allocation6], %s364
        %s366 = sand.u32 %s81, 1
        %s367 = smul.addr %s366, 16
        %s368 = scalar_lea.vmem [#allocation5], %s367
        // Predicated region
        $region41: #{tpu_custom_call.1} parent=35 // pred_check
          %p369 = pneg %p94
        $region42: #{tpu_custom_call.1} parent=35 // pred_check_branch
          %371 = sbr.rel (%p369) target = $region44
        $region43: #{tpu_custom_call.1} parent=35 // pred_region
          %372 = dma.done %s365, 256
        $region44: #{tpu_custom_call.1} parent=35 // pred_fallthru
          _
        %s373 = sand.u32 %s31, 1
        %s374 = scalar_lea.sflag [#allocation6], %s373
        %s375 = sand.u32 %s109, 1
        %s376 = smul.addr %s375, 4
        %s377 = scalar_lea.vmem [#allocation7], %s376
        // Predicated region
        $region45: #{tpu_custom_call.1} parent=35 // pred_check
          %p378 = pneg %p122
        $region46: #{tpu_custom_call.1} parent=35 // pred_check_branch
          %380 = sbr.rel (%p378) target = $region48
        $region47: #{tpu_custom_call.1} parent=35 // pred_region
          %381 = dma.done %s374, 64
        $region48: #{tpu_custom_call.1} parent=35 // pred_fallthru
          _
        %s382 = sand.u32 %s53, 1
        %s383 = scalar_lea.sflag [#allocation3], %s382
        %s384 = sand.u32 %s53, 1
        %s385 = smul.addr %s384, 16
        %s386 = scalar_lea.vmem [#allocation2], %s385
        %p387 = pneg %p66
        %p388 = pneg %p63
        %s389 = sand.u32 %s31, 1
        %s390 = scalar_lea.sflag [#allocation6], %s389
        %s391 = sand.u32 %s81, 1
        %s392 = smul.addr %s391, 16
        %s393 = scalar_lea.vmem [#allocation5], %s392
        %p394 = pneg %p94
        %p395 = pneg %p91
        %s396 = sand.u32 %s31, 1
        %s397 = scalar_lea.sflag [#allocation6], %s396
        %s398 = sand.u32 %s109, 1
        %s399 = smul.addr %s398, 4
        %s400 = scalar_lea.vmem [#allocation7], %s399
        %p401 = pneg %p122
        %p402 = pneg %p119
        %s403 = smul.u32 4, %s36
        %p404 = scmp.lt.s32.totalorder %s35, 1
        %s405 = scalar_select %p404, %s35, 1
        %p406 = scmp.lt.s32.totalorder %s403, 3
        %s407 = scalar_select %p406, %s403, 3
        %s408 = smul.addr %s405, 4
        %s409 = sadd.s32 %s407, %s408
        %s410 = scalar_lea.vmem %s3, %s409
        %p411 = pneg %p150
        %p412 = pneg %p147
        %p413 = pneg %p176
        %p414 = pneg %p173
        %s415 = sand.u32 %s163, 1
        %s416 = scalar_lea.sflag [#allocation4], %s415
        %s417 = sand.u32 %s163, 1
        %s418 = smul.addr %s417, 4
        %s419 = scalar_lea.vmem [#allocation8], %s418
        %p420 = pneg %p202
        %p421 = pneg %p199
        %s422 = sand.u32 %s189, 1
        %s423 = scalar_lea.sflag [#allocation10], %s422
        %s424 = sand.u32 %s189, 1
        %s425 = smul.addr %s424, 4
        %s426 = scalar_lea.vmem [#allocation9], %s425
        %p427 = pneg %p228
        %p428 = pneg %p225
        %p429 = scmp.lt.s32.totalorder %s35, 1
        %s430 = scalar_select %p429, %s35, 1
        %s431 = smul.addr %s430, 4
        %s432 = scalar_lea.vmem %s6, %s431
        %p433 = pneg %p254
        %p434 = pneg %p251
        %p435 = scmp.lt.s32.totalorder %s35, 1
        %s436 = scalar_select %p435, %s35, 1
        %s437 = smul.addr %s436, 4
        %s438 = scalar_lea.vmem %s7, %s437
        %s439 = smul.u32 4, %s36
        %s440 = smul.u32 4, %s36
        %s441 = smul.u32 4, %s36
        %s442 = smul.u32 4, %s36
        %p443 = scmp.lt.s32.totalorder %s35, 1
        %s444 = scalar_select %p443, %s35, 1
        %p445 = scmp.lt.s32.totalorder %s442, 3
        %s446 = scalar_select %p445, %s442, 3
        %s447 = smul.addr %s444, 4
        %s448 = sadd.s32 %s446, %s447
        %s449 = scalar_lea.vmem %s3, %s448
        %s450 = smul.u32 4, %s36
        %p451 = scmp.lt.s32.totalorder %s35, 1
        %s452 = scalar_select %p451, %s35, 1
        %s453 = smul.addr %s452, 4
        %s454 = scalar_lea.vmem %s6, %s453
        %p455 = scmp.lt.s32.totalorder %s35, 1
        %s456 = scalar_select %p455, %s35, 1
        %s457 = smul.addr %s456, 4
        %s458 = scalar_lea.vmem %s7, %s457
        %p459 = scmp.eq.s32.totalorder %s36, 0
        // Predicated region
        $region49: #{tpu_custom_call.1} parent=35 // pred_check
          %p460 = pneg %p459
        $region50: #{tpu_custom_call.1} parent=35 // pred_check_branch
          %462 = sbr.rel (%p460) target = $region52
        $region51: #{tpu_custom_call.1} parent=35 // pred_region
          %vm463 = vcmask 27648
          %464 = vst.msk [vmem:[%s419] sm:$0xf] %vm463, 0.0
          %465 = vst.msk [vmem:[%s426] sm:$0xf] %vm463, 0.0
          %vm466 = vcmask 3072
          %467 = vst.msk [vmem:[%s454] sm:$0xf] %vm466, 0.0
          %468 = vst.msk [vmem:[%s458] sm:$0xf] %vm466, 0.0
        $region52: #{tpu_custom_call.1} parent=35 // pred_fallthru
          _
        %v469 = vld [vmem:[%s359] sm:$0xff]
        %v470 = vld [vmem:[%s359 + $0x8] sm:$0xff]
        %v471 = vld [vmem:[%s368] sm:$0xff]
        %v472 = vld [vmem:[%s368 + $0x8] sm:$0xff]
        %v473 = vld [vmem:[%s377] sm:$0xf]
        %v474 = vld [vmem:[%s449] sm:$0xf]
        %v475 = vlaneseq
        %v476 = vshrl.u32 %v475, 7
        %v477 = vlaneseq
        %v478 = vshrl.u32 %v477, 7
        %v479 = vsub.s32 0, %v478
        %v480 = vrot.slane %v473, %v479
        %v481 = vlaneseq
        %v482 = vshrl.u32 %v481, 7
        %v483 = vsub.s32 1, %v482
        %v484 = vrot.slane %v473, %v483
        %v485 = vlaneseq
        %v486 = vshrl.u32 %v485, 7
        %v487 = vsub.s32 2, %v486
        %v488 = vrot.slane %v473, %v487
        %v489 = vlaneseq
        %v490 = vshrl.u32 %v489, 7
        %v491 = vsub.s32 3, %v490
        %v492 = vrot.slane %v473, %v491
        %vm493 = vcmp.eq.s32.totalorder %v476, %v480
        %vm494 = vcmp.eq.s32.totalorder %v476, %v484
        %vm495 = vcmp.eq.s32.totalorder %v476, %v488
        %vm496 = vcmp.eq.s32.totalorder %v476, %v492
        %v497 = vsel %vm493, 1, 0
        %v498 = vsel %vm494, 1, 0
        %v499 = vsel %vm495, 1, 0
        %v500 = vsel %vm496, 1, 0
        %v501 = vcvt.s32.f32 %v497
        %v502 = vcvt.s32.f32 %v498
        %v503 = vcvt.s32.f32 %v499
        %v504 = vcvt.s32.f32 %v500
        %v505 = vlaneseq
        %v506 = vshrl.u32 %v505, 7
        %v507 = vsub.s32 0, %v506
        %v508 = vrot.slane %v474, %v507
        %v509 = vlaneseq
        %v510 = vshrl.u32 %v509, 7
        %v511 = vsub.s32 1, %v510
        %v512 = vrot.slane %v474, %v511
        %v513 = vlaneseq
        %v514 = vshrl.u32 %v513, 7
        %v515 = vsub.s32 2, %v514
        %v516 = vrot.slane %v474, %v515
        %v517 = vlaneseq
        %v518 = vshrl.u32 %v517, 7
        %v519 = vsub.s32 3, %v518
        %v520 = vrot.slane %v474, %v519
        %vm521 = vcmp.eq.s32.totalorder %v476, %v508
        %vm522 = vcmp.eq.s32.totalorder %v476, %v512
        %vm523 = vcmp.eq.s32.totalorder %v476, %v516
        %vm524 = vcmp.eq.s32.totalorder %v476, %v520
        %v525 = vsel %vm521, 1, 0
        %v526 = vsel %vm522, 1, 0
        %v527 = vsel %vm523, 1, 0
        %v528 = vsel %vm524, 1, 0
        %v529 = vcvt.s32.f32 %v525
        %v530 = vcvt.s32.f32 %v526
        %v531 = vcvt.s32.f32 %v527
        %v532 = vcvt.s32.f32 %v528
        %v533 = vld [vmem:[%s419] sm:$0xf]
        %v536 = vcombine.high %v469, %v469
        %v537 = vcombine.high %v470, %v470
        %540 = vmatprep.subr.mxu0 %v536
        %541 = vmatpush1.xpose.msra.mxu0 %v469
        %542 = vmatprep.subr.mxu0 0.0
        %543 = vmatpush1.xpose.msra.mxu0 0.0
        %544 = vmatprep.subr.mxu0 0.0
        %545 = vmatpush1.xpose.msra.mxu0 0.0
        %546 = vmatprep.subr.mxu0 0.0
        %547 = vmatpush1.xpose.msra.mxu0 0.0
        %548 = vmatprep.subr.mxu0 0.0
        %549 = vmatpush1.xpose.msra.mxu0 0.0
        %550 = vmatprep.subr.mxu0 0.0
        %551 = vmatpush1.xpose.msra.mxu0 0.0
        %552 = vmatprep.subr.mxu0 0.0
        %553 = vmatpush1.xpose.msra.mxu0 0.0
        %554 = vmatprep.subr.mxu0 0.0
        %555 = vmatpush1.xpose.msra.mxu0 0.0
        %556 = vmatprep.subr.mxu0 0.0
        %557 = vmatpush1.xpose.msra.mxu0 0.0
        %558 = vmatprep.subr.mxu0 0.0
        %559 = vmatpush1.xpose.msra.mxu0 0.0
        %560 = vmatprep.subr.mxu0 0.0
        %561 = vmatpush1.xpose.msra.mxu0 0.0
        %562 = vmatprep.subr.mxu0 0.0
        %563 = vmatpush1.xpose.msra.mxu0 0.0
        %564 = vmatprep.subr.mxu0 0.0
        %565 = vmatpush1.xpose.msra.mxu0 0.0
        %566 = vmatprep.subr.mxu0 0.0
        %567 = vmatpush1.xpose.msra.mxu0 0.0
        %568 = vmatprep.subr.mxu0 0.0
        %569 = vmatpush1.xpose.msra.mxu0 0.0
        %570 = vmatprep.subr.mxu0 0.0
        %571 = vmatpush1.xpose.msra.mxu0 0.0
        %572 = vmatprep.subr.mxu0 0.0
        %573 = vmatpush1.xpose.msra.mxu0 0.0
        %574 = vmatprep.subr.mxu0 0.0
        %575 = vmatpush1.xpose.msra.mxu0 0.0
        %576 = vmatprep.subr.mxu0 0.0
        %577 = vmatpush1.xpose.msra.mxu0 0.0
        %578 = vmatprep.subr.mxu0 0.0
        %579 = vmatpush1.xpose.msra.mxu0 0.0
        %580 = vmatprep.subr.mxu0 0.0
        %581 = vmatpush1.xpose.msra.mxu0 0.0
        %582 = vmatprep.subr.mxu0 0.0
        %583 = vmatpush1.xpose.msra.mxu0 0.0
        %584 = vmatprep.subr.mxu0 0.0
        %585 = vmatpush1.xpose.msra.mxu0 0.0
        %586 = vmatprep.subr.mxu0 0.0
        %587 = vmatpush1.xpose.msra.mxu0 0.0
        %588 = vmatprep.subr.mxu0 0.0
        %589 = vmatpush1.xpose.msra.mxu0 0.0
        %590 = vmatprep.subr.mxu0 0.0
        %591 = vmatpush1.xpose.msra.mxu0 0.0
        %592 = vmatprep.subr.mxu0 0.0
        %593 = vmatpush1.xpose.msra.mxu0 0.0
        %594 = vmatprep.subr.mxu0 0.0
        %595 = vmatpush1.xpose.msra.mxu0 0.0
        %596 = vmatprep.subr.mxu0 0.0
        %597 = vmatpush1.xpose.msra.mxu0 0.0
        %598 = vmatprep.subr.mxu0 0.0
        %599 = vmatpush1.xpose.msra.mxu0 0.0
        %600 = vmatprep.subr.mxu0 0.0
        %601 = vmatpush1.xpose.msra.mxu0 0.0
        %602 = vmatprep.subr.mxu0 0.0
        %603 = vmatpush1.xpose.msra.mxu0 0.0
        %604 = vmatprep.mubr.f32.mxu0 %v502
        %605 = vmatmul.mubr.f32.gmra.mrb[0].mxu0 %v501
        %v606 = vpop.f32.mrb[0].mxu0
        %v607 = vadd.f32 0.0, %v606
        %v608 = vpop.f32.mrb[0].mxu0
        %609 = vdwg.mxu0
        %610 = vmatprep.subr.mxu0 %v537
        %611 = vmatpush1.xpose.msra.mxu0 %v470
        %612 = vmatprep.subr.mxu0 0.0
        %613 = vmatpush1.xpose.msra.mxu0 0.0
        %614 = vmatprep.subr.mxu0 0.0
        %615 = vmatpush1.xpose.msra.mxu0 0.0
        %616 = vmatprep.subr.mxu0 0.0
        %617 = vmatpush1.xpose.msra.mxu0 0.0
        %618 = vmatprep.subr.mxu0 0.0
        %619 = vmatpush1.xpose.msra.mxu0 0.0
        %620 = vmatprep.subr.mxu0 0.0
        %621 = vmatpush1.xpose.msra.mxu0 0.0
        %622 = vmatprep.subr.mxu0 0.0
        %623 = vmatpush1.xpose.msra.mxu0 0.0
        %624 = vmatprep.subr.mxu0 0.0
        %625 = vmatpush1.xpose.msra.mxu0 0.0
        %626 = vmatprep.subr.mxu0 0.0
        %627 = vmatpush1.xpose.msra.mxu0 0.0
        %628 = vmatprep.subr.mxu0 0.0
        %629 = vmatpush1.xpose.msra.mxu0 0.0
        %630 = vmatprep.subr.mxu0 0.0
        %631 = vmatpush1.xpose.msra.mxu0 0.0
        %632 = vmatprep.subr.mxu0 0.0
        %633 = vmatpush1.xpose.msra.mxu0 0.0
        %634 = vmatprep.subr.mxu0 0.0
        %635 = vmatpush1.xpose.msra.mxu0 0.0
        %636 = vmatprep.subr.mxu0 0.0
        %637 = vmatpush1.xpose.msra.mxu0 0.0
        %638 = vmatprep.subr.mxu0 0.0
        %639 = vmatpush1.xpose.msra.mxu0 0.0
        %640 = vmatprep.subr.mxu0 0.0
        %641 = vmatpush1.xpose.msra.mxu0 0.0
        %642 = vmatprep.subr.mxu0 0.0
        %643 = vmatpush1.xpose.msra.mxu0 0.0
        %644 = vmatprep.subr.mxu0 0.0
        %645 = vmatpush1.xpose.msra.mxu0 0.0
        %646 = vmatprep.subr.mxu0 0.0
        %647 = vmatpush1.xpose.msra.mxu0 0.0
        %648 = vmatprep.subr.mxu0 0.0
        %649 = vmatpush1.xpose.msra.mxu0 0.0
        %650 = vmatprep.subr.mxu0 0.0
        %651 = vmatpush1.xpose.msra.mxu0 0.0
        %652 = vmatprep.subr.mxu0 0.0
        %653 = vmatpush1.xpose.msra.mxu0 0.0
        %654 = vmatprep.subr.mxu0 0.0
        %655 = vmatpush1.xpose.msra.mxu0 0.0
        %656 = vmatprep.subr.mxu0 0.0
        %657 = vmatpush1.xpose.msra.mxu0 0.0
        %658 = vmatprep.subr.mxu0 0.0
        %659 = vmatpush1.xpose.msra.mxu0 0.0
        %660 = vmatprep.subr.mxu0 0.0
        %661 = vmatpush1.xpose.msra.mxu0 0.0
        %662 = vmatprep.subr.mxu0 0.0
        %663 = vmatpush1.xpose.msra.mxu0 0.0
        %664 = vmatprep.subr.mxu0 0.0
        %665 = vmatpush1.xpose.msra.mxu0 0.0
        %666 = vmatprep.subr.mxu0 0.0
        %667 = vmatpush1.xpose.msra.mxu0 0.0
        %668 = vmatprep.subr.mxu0 0.0
        %669 = vmatpush1.xpose.msra.mxu0 0.0
        %670 = vmatprep.subr.mxu0 0.0
        %671 = vmatpush1.xpose.msra.mxu0 0.0
        %672 = vmatprep.subr.mxu0 0.0
        %673 = vmatpush1.xpose.msra.mxu0 0.0
        %674 = vmatprep.mubr.f32.mxu0 %v504
        %675 = vmatmul.mubr.f32.gmra.mrb[0].mxu0 %v503
        %v676 = vpop.f32.mrb[0].mxu0
        %v677 = vadd.f32 %v607, %v676
        %v678 = vpop.f32.mrb[0].mxu0
        %679 = vdwg.mxu0
        %v680 = vadd.f32 %v533, %v677
        %vm681 = vcmask 27648
        %682 = vst.msk [vmem:[%s419] sm:$0xf] %vm681, %v680
        %v683 = vld [vmem:[%s426] sm:$0xf]
        %v686 = vcombine.high %v471, %v471
        %v687 = vcombine.high %v472, %v472
        %690 = vmatprep.subr.mxu0 %v686
        %691 = vmatpush1.xpose.msra.mxu0 %v471
        %692 = vmatprep.subr.mxu0 0.0
        %693 = vmatpush1.xpose.msra.mxu0 0.0
        %694 = vmatprep.subr.mxu0 0.0
        %695 = vmatpush1.xpose.msra.mxu0 0.0
        %696 = vmatprep.subr.mxu0 0.0
        %697 = vmatpush1.xpose.msra.mxu0 0.0
        %698 = vmatprep.subr.mxu0 0.0
        %699 = vmatpush1.xpose.msra.mxu0 0.0
        %700 = vmatprep.subr.mxu0 0.0
        %701 = vmatpush1.xpose.msra.mxu0 0.0
        %702 = vmatprep.subr.mxu0 0.0
        %703 = vmatpush1.xpose.msra.mxu0 0.0
        %704 = vmatprep.subr.mxu0 0.0
        %705 = vmatpush1.xpose.msra.mxu0 0.0
        %706 = vmatprep.subr.mxu0 0.0
        %707 = vmatpush1.xpose.msra.mxu0 0.0
        %708 = vmatprep.subr.mxu0 0.0
        %709 = vmatpush1.xpose.msra.mxu0 0.0
        %710 = vmatprep.subr.mxu0 0.0
        %711 = vmatpush1.xpose.msra.mxu0 0.0
        %712 = vmatprep.subr.mxu0 0.0
        %713 = vmatpush1.xpose.msra.mxu0 0.0
        %714 = vmatprep.subr.mxu0 0.0
        %715 = vmatpush1.xpose.msra.mxu0 0.0
        %716 = vmatprep.subr.mxu0 0.0
        %717 = vmatpush1.xpose.msra.mxu0 0.0
        %718 = vmatprep.subr.mxu0 0.0
        %719 = vmatpush1.xpose.msra.mxu0 0.0
        %720 = vmatprep.subr.mxu0 0.0
        %721 = vmatpush1.xpose.msra.mxu0 0.0
        %722 = vmatprep.subr.mxu0 0.0
        %723 = vmatpush1.xpose.msra.mxu0 0.0
        %724 = vmatprep.subr.mxu0 0.0
        %725 = vmatpush1.xpose.msra.mxu0 0.0
        %726 = vmatprep.subr.mxu0 0.0
        %727 = vmatpush1.xpose.msra.mxu0 0.0
        %728 = vmatprep.subr.mxu0 0.0
        %729 = vmatpush1.xpose.msra.mxu0 0.0
        %730 = vmatprep.subr.mxu0 0.0
        %731 = vmatpush1.xpose.msra.mxu0 0.0
        %732 = vmatprep.subr.mxu0 0.0
        %733 = vmatpush1.xpose.msra.mxu0 0.0
        %734 = vmatprep.subr.mxu0 0.0
        %735 = vmatpush1.xpose.msra.mxu0 0.0
        %736 = vmatprep.subr.mxu0 0.0
        %737 = vmatpush1.xpose.msra.mxu0 0.0
        %738 = vmatprep.subr.mxu0 0.0
        %739 = vmatpush1.xpose.msra.mxu0 0.0
        %740 = vmatprep.subr.mxu0 0.0
        %741 = vmatpush1.xpose.msra.mxu0 0.0
        %742 = vmatprep.subr.mxu0 0.0
        %743 = vmatpush1.xpose.msra.mxu0 0.0
        %744 = vmatprep.subr.mxu0 0.0
        %745 = vmatpush1.xpose.msra.mxu0 0.0
        %746 = vmatprep.subr.mxu0 0.0
        %747 = vmatpush1.xpose.msra.mxu0 0.0
        %748 = vmatprep.subr.mxu0 0.0
        %749 = vmatpush1.xpose.msra.mxu0 0.0
        %750 = vmatprep.subr.mxu0 0.0
        %751 = vmatpush1.xpose.msra.mxu0 0.0
        %752 = vmatprep.subr.mxu0 0.0
        %753 = vmatpush1.xpose.msra.mxu0 0.0
        %754 = vmatprep.mubr.f32.mxu0 %v530
        %755 = vmatmul.mubr.f32.gmra.mrb[0].mxu0 %v529
        %v756 = vpop.f32.mrb[0].mxu0
        %v757 = vadd.f32 0.0, %v756
        %v758 = vpop.f32.mrb[0].mxu0
        %759 = vdwg.mxu0
        %760 = vmatprep.subr.mxu0 %v687
        %761 = vmatpush1.xpose.msra.mxu0 %v472
        %762 = vmatprep.subr.mxu0 0.0
        %763 = vmatpush1.xpose.msra.mxu0 0.0
        %764 = vmatprep.subr.mxu0 0.0
        %765 = vmatpush1.xpose.msra.mxu0 0.0
        %766 = vmatprep.subr.mxu0 0.0
        %767 = vmatpush1.xpose.msra.mxu0 0.0
        %768 = vmatprep.subr.mxu0 0.0
        %769 = vmatpush1.xpose.msra.mxu0 0.0
        %770 = vmatprep.subr.mxu0 0.0
        %771 = vmatpush1.xpose.msra.mxu0 0.0
        %772 = vmatprep.subr.mxu0 0.0
        %773 = vmatpush1.xpose.msra.mxu0 0.0
        %774 = vmatprep.subr.mxu0 0.0
        %775 = vmatpush1.xpose.msra.mxu0 0.0
        %776 = vmatprep.subr.mxu0 0.0
        %777 = vmatpush1.xpose.msra.mxu0 0.0
        %778 = vmatprep.subr.mxu0 0.0
        %779 = vmatpush1.xpose.msra.mxu0 0.0
        %780 = vmatprep.subr.mxu0 0.0
        %781 = vmatpush1.xpose.msra.mxu0 0.0
        %782 = vmatprep.subr.mxu0 0.0
        %783 = vmatpush1.xpose.msra.mxu0 0.0
        %784 = vmatprep.subr.mxu0 0.0
        %785 = vmatpush1.xpose.msra.mxu0 0.0
        %786 = vmatprep.subr.mxu0 0.0
        %787 = vmatpush1.xpose.msra.mxu0 0.0
        %788 = vmatprep.subr.mxu0 0.0
        %789 = vmatpush1.xpose.msra.mxu0 0.0
        %790 = vmatprep.subr.mxu0 0.0
        %791 = vmatpush1.xpose.msra.mxu0 0.0
        %792 = vmatprep.subr.mxu0 0.0
        %793 = vmatpush1.xpose.msra.mxu0 0.0
        %794 = vmatprep.subr.mxu0 0.0
        %795 = vmatpush1.xpose.msra.mxu0 0.0
        %796 = vmatprep.subr.mxu0 0.0
        %797 = vmatpush1.xpose.msra.mxu0 0.0
        %798 = vmatprep.subr.mxu0 0.0
        %799 = vmatpush1.xpose.msra.mxu0 0.0
        %800 = vmatprep.subr.mxu0 0.0
        %801 = vmatpush1.xpose.msra.mxu0 0.0
        %802 = vmatprep.subr.mxu0 0.0
        %803 = vmatpush1.xpose.msra.mxu0 0.0
        %804 = vmatprep.subr.mxu0 0.0
        %805 = vmatpush1.xpose.msra.mxu0 0.0
        %806 = vmatprep.subr.mxu0 0.0
        %807 = vmatpush1.xpose.msra.mxu0 0.0
        %808 = vmatprep.subr.mxu0 0.0
        %809 = vmatpush1.xpose.msra.mxu0 0.0
        %810 = vmatprep.subr.mxu0 0.0
        %811 = vmatpush1.xpose.msra.mxu0 0.0
        %812 = vmatprep.subr.mxu0 0.0
        %813 = vmatpush1.xpose.msra.mxu0 0.0
        %814 = vmatprep.subr.mxu0 0.0
        %815 = vmatpush1.xpose.msra.mxu0 0.0
        %816 = vmatprep.subr.mxu0 0.0
        %817 = vmatpush1.xpose.msra.mxu0 0.0
        %818 = vmatprep.subr.mxu0 0.0
        %819 = vmatpush1.xpose.msra.mxu0 0.0
        %820 = vmatprep.subr.mxu0 0.0
        %821 = vmatpush1.xpose.msra.mxu0 0.0
        %822 = vmatprep.subr.mxu0 0.0
        %823 = vmatpush1.xpose.msra.mxu0 0.0
        %824 = vmatprep.mubr.f32.mxu0 %v532
        %825 = vmatmul.mubr.f32.gmra.mrb[0].mxu0 %v531
        %v826 = vpop.f32.mrb[0].mxu0
        %v827 = vadd.f32 %v757, %v826
        %v828 = vpop.f32.mrb[0].mxu0
        %829 = vdwg.mxu0
        %v830 = vadd.f32 %v683, %v827
        %831 = vst.msk [vmem:[%s426] sm:$0xf] %vm681, %v830
        %v832 = vld [vmem:[%s454] sm:$0xf]
        %vm833 = vcmask 1043456
        %v834 = vsel %vm833, %v501, 0.0
        %v835 = vsel %vm833, %v502, 0.0
        %v836 = vadd.f32 %v834, %v835
        %v837 = vsel %vm833, %v503, 0.0
        %v838 = vadd.f32 %v836, %v837
        %v839 = vsel %vm833, %v504, 0.0
        %v840 = vadd.f32 %v838, %v839
        %841 = vadd.xlane.f32.xlu0 %v840
        %v842 = vpop.xlane.xlu0 %841
        %v843 = vadd.f32 %v832, %v842
        %vm844 = vcmask 3072
        %845 = vst.msk [vmem:[%s454] sm:$0xf] %vm844, %v843
        %v846 = vld [vmem:[%s458] sm:$0xf]
        %v847 = vsel %vm833, %v529, 0.0
        %v848 = vsel %vm833, %v530, 0.0
        %v849 = vadd.f32 %v847, %v848
        %v850 = vsel %vm833, %v531, 0.0
        %v851 = vadd.f32 %v849, %v850
        %v852 = vsel %vm833, %v532, 0.0
        %v853 = vadd.f32 %v851, %v852
        %854 = vadd.xlane.f32.xlu0 %v853
        %v855 = vpop.xlane.xlu0 %854
        %v856 = vadd.f32 %v846, %v855
        %857 = vst.msk [vmem:[%s458] sm:$0xf] %vm844, %v856
        %s858 = sand.u32 %s163, 1
        %s859 = scalar_lea.sflag [#allocation4], %s858
        %s860 = sand.u32 %s163, 1
        %s861 = smul.addr %s860, 4
        %s862 = scalar_lea.vmem [#allocation8], %s861
        %s863 = sand.u32 %s189, 1
        %s864 = scalar_lea.sflag [#allocation10], %s863
        %s865 = sand.u32 %s189, 1
        %s866 = smul.addr %s865, 4
        %s867 = scalar_lea.vmem [#allocation9], %s866
        %p868 = scmp.lt.s32.totalorder %s35, 1
        %s869 = scalar_select %p868, %s35, 1
        %s870 = smul.addr %s869, 4
        %s871 = scalar_lea.vmem %s6, %s870
        %p872 = scmp.lt.s32.totalorder %s35, 1
        %s873 = scalar_select %p872, %s35, 1
        %s874 = smul.addr %s873, 4
        %s875 = scalar_lea.vmem %s7, %s874
        // Predicated region
        $region53: #{tpu_custom_call.1} parent=35 // pred_check
          %p876 = pneg %p173
        $region54: #{tpu_custom_call.1} parent=35 // pred_check_branch
          %878 = sbr.rel (%p876) target = $region56
        $region55: #{tpu_custom_call.1} parent=35 // pred_region
          %s880 = ssub.s32 64, 64
          %881 = vsyncadd %s859, %s880
          %s882 = smul.addr %s35, 64
          %s883 = scalar_lea.hbm %s4, %s882
          %s885 = sshll.u32 %s862, 4
          %s886 = int_to_ptr.vmem [resolvable:$true] %s885
          %888 = dma.vmem_to_hbm [thread:$0]  %s886, 64, %s883, %s859
        $region56: #{tpu_custom_call.1} parent=35 // pred_fallthru
          _
        // Predicated region
        $region57: #{tpu_custom_call.1} parent=35 // pred_check
          %p889 = pneg %p199
        $region58: #{tpu_custom_call.1} parent=35 // pred_check_branch
          %891 = sbr.rel (%p889) target = $region60
        $region59: #{tpu_custom_call.1} parent=35 // pred_region
          %s893 = ssub.s32 64, 64
          %894 = vsyncadd %s864, %s893
          %s895 = smul.addr %s35, 64
          %s896 = scalar_lea.hbm %s5, %s895
          %s898 = sshll.u32 %s867, 4
          %s899 = int_to_ptr.vmem [resolvable:$true] %s898
          %901 = dma.vmem_to_hbm [thread:$0]  %s899, 64, %s896, %s864
        $region60: #{tpu_custom_call.1} parent=35 // pred_fallthru
          _
        // Predicated region
        $region61: #{tpu_custom_call.1} parent=35 // pred_check
          %p902 = pneg %p225
        $region62: #{tpu_custom_call.1} parent=35 // pred_check_branch
          %904 = sbr.rel (%p902) target = $region64
        $region63: #{tpu_custom_call.1} parent=35 // pred_region
          _
        $region64: #{tpu_custom_call.1} parent=35 // pred_fallthru
          _
        // Predicated region
        $region65: #{tpu_custom_call.1} parent=35 // pred_check
          %p905 = pneg %p251
        $region66: #{tpu_custom_call.1} parent=35 // pred_check_branch
          %907 = sbr.rel (%p905) target = $region68
        $region67: #{tpu_custom_call.1} parent=35 // pred_region
          _
        $region68: #{tpu_custom_call.1} parent=35 // pred_fallthru
          _
      $region36: #{tpu_custom_call.1} parent=5 // pred_fallthru
        _
      %p908 = scmp.le.s32.totalorder 2, %s26
      // Predicated region
      $region69: #{tpu_custom_call.1} parent=5 // pred_check
        %p909 = pneg %p908
      $region70: #{tpu_custom_call.1} parent=5 // pred_check_branch
        %911 = sbr.rel (%p909) target = $region72
      $region71: #{tpu_custom_call.1} parent=5 // pred_region
        %s912 = ssub.s32 %s26, 2
        // Predicated region
        $region73: #{tpu_custom_call.1} parent=71 // pred_check
          %p913 = pneg %p179
        $region74: #{tpu_custom_call.1} parent=71 // pred_check_branch
          %915 = sbr.rel (%p913) target = $region76
        $region75: #{tpu_custom_call.1} parent=71 // pred_region
          %s916 = sand.u32 %s164, 1
          %s917 = scalar_lea.sflag [#allocation4], %s916
          %s918 = sand.u32 %s164, 1
          %s919 = smul.addr %s918, 4
          %s920 = scalar_lea.vmem [#allocation8], %s919
          %921 = dma.done %s917, 64
        $region76: #{tpu_custom_call.1} parent=71 // pred_fallthru
          _
        // Predicated region
        $region77: #{tpu_custom_call.1} parent=71 // pred_check
          %p922 = pneg %p205
        $region78: #{tpu_custom_call.1} parent=71 // pred_check_branch
          %924 = sbr.rel (%p922) target = $region80
        $region79: #{tpu_custom_call.1} parent=71 // pred_region
          %s925 = sand.u32 %s190, 1
          %s926 = scalar_lea.sflag [#allocation10], %s925
          %s927 = sand.u32 %s190, 1
          %s928 = smul.addr %s927, 4
          %s929 = scalar_lea.vmem [#allocation9], %s928
          %930 = dma.done %s926, 64
        $region80: #{tpu_custom_call.1} parent=71 // pred_fallthru
          _
        // Predicated region
        $region81: #{tpu_custom_call.1} parent=71 // pred_check
          %p931 = pneg %p231
        $region82: #{tpu_custom_call.1} parent=71 // pred_check_branch
          %933 = sbr.rel (%p931) target = $region84
        $region83: #{tpu_custom_call.1} parent=71 // pred_region
          %p934 = scmp.lt.s32.totalorder %s37, 1
          %s935 = scalar_select %p934, %s37, 1
          %s936 = smul.addr %s935, 4
          %s937 = scalar_lea.vmem %s6, %s936
        $region84: #{tpu_custom_call.1} parent=71 // pred_fallthru
          _
        // Predicated region
        $region85: #{tpu_custom_call.1} parent=71 // pred_check
          %p938 = pneg %p257
        $region86: #{tpu_custom_call.1} parent=71 // pred_check_branch
          %940 = sbr.rel (%p938) target = $region88
        $region87: #{tpu_custom_call.1} parent=71 // pred_region
          %p941 = scmp.lt.s32.totalorder %s37, 1
          %s942 = scalar_select %p941, %s37, 1
          %s943 = smul.addr %s942, 4
          %s944 = scalar_lea.vmem %s7, %s943
        $region88: #{tpu_custom_call.1} parent=71 // pred_fallthru
          _
      $region72: #{tpu_custom_call.1} parent=5 // pred_fallthru
        _
    $region6: #{tpu_custom_call.1} parent=1 // loop_footer
      %s30 = sadd.s32 1, %s26
    $region7: #{tpu_custom_call.1} parent=1 // loop_footer_branch
      %25 = sbr.rel target = $region3
    $region8: #{tpu_custom_call.1} parent=1 // loop_exit
      _
    %945 = vsyncpa [#allocation3], 1
    %s946 = scalar_lea.sflag [#allocation3], 1
    %947 = vsyncpa %s946, 1
    %948 = vsyncpa [#allocation6], 1
    %s949 = scalar_lea.sflag [#allocation6], 1
    %950 = vsyncpa %s949, 1
    %951 = vsyncpa [#allocation4], 1
    %s952 = scalar_lea.sflag [#allocation4], 1
    %953 = vsyncpa %s952, 1
    %954 = vsyncpa [#allocation10], 1
    %s955 = scalar_lea.sflag [#allocation10], 1
    %956 = vsyncpa %s955, 1

</llo_original>
